<compile_context>
chip_gen: v7x
topology: tpu7x:2x2x1
jax: 0.10.0
libtpu: 0.0.40
codegen_flags: <defaults>
</compile_context>

<pallas_src>
import jax
import jax.numpy as jnp
from jax import lax
from jax.experimental import pallas as pl
from jax.experimental.pallas import tpu as pltpu

EPS = 1e-5
NEG_SLOPE = 0.01


def returnnet_kernel(x_ref, w1p_ref, w2_ref, o_ref):
    # x_ref : [B, D_in]      f32   (one complete BatchNorm batch)
    # w1p_ref: [D_in + 8, H] f32   rows 0..D_in-1 : fc1 weight (f32)
    #                              row D_in+0/+1  : bn1 gamma / beta
    #                              row D_in+2/+3  : bn2 gamma / beta
    #                              row D_in+4     : fc3 weight (as a row)
    #                              row D_in+5     : fc3 bias (broadcast)
    #                              rows +6/+7     : padding
    # w2_ref : [H, H]        bf16
    # o_ref  : [B, 1]        f32
    B, D = x_ref.shape

    w1 = w1p_ref[0:D, :].astype(jnp.bfloat16)      # VPU cast, 2 vregs at D=16
    pk = w1p_ref[D:D + 8, :]
    g1, be1 = pk[0:1, :], pk[1:2, :]
    g2, be2 = pk[2:3, :], pk[3:4, :]
    w3_row = pk[4:5, :]
    b3 = pk[5:6, 0:1]

    # ---- fc1 (bias dropped: training-mode BN cancels it exactly) ----
    h = jnp.dot(x_ref[...].astype(jnp.bfloat16), w1,
                preferred_element_type=jnp.float32)

    # ---- bn1: single-pass batch stats + fused scale/shift (f32 VPU math) ----
    mu = jnp.mean(h, axis=0, keepdims=True)
    var = jnp.maximum(jnp.mean(h * h, axis=0, keepdims=True) - mu * mu, 0.0)
    s = g1 * lax.rsqrt(var + EPS)
    h = h * s + (be1 - mu * s)

    # ---- fc2 (bias dropped, same reason) ----
    h = jnp.dot(h.astype(jnp.bfloat16), w2_ref[...],
                preferred_element_type=jnp.float32)

    # ---- bn2 ----
    mu = jnp.mean(h, axis=0, keepdims=True)
    var = jnp.maximum(jnp.mean(h * h, axis=0, keepdims=True) - mu * mu, 0.0)
    s = g2 * lax.rsqrt(var + EPS)
    h = h * s + (be2 - mu * s)

    # ---- LeakyReLU(0.01): single vmax ----
    h = jnp.maximum(h, NEG_SLOPE * h)

    # ---- fc3: N=1 output column -> VPU multiply + lane reduce (no MXU) ----
    out = jnp.sum(h * w3_row, axis=-1, keepdims=True) + b3
    o_ref[...] = out.astype(o_ref.dtype)


def returnnet_forward(x, kernel_params):
    """x: [B, D_in] or [G, B, D_in] float32 -> [B, 1] or [G, B, 1] float32.

    A 3-D input is treated as G *independent* BatchNorm batches (independent
    forward calls), executed as a "parallel" grid axis (uses both TCs on v7x).
    """
    squeeze = x.ndim == 2
    if squeeze:
        x = x[None]
    G, B, D = x.shape
    w1p = kernel_params["w1p"]
    w2 = kernel_params["w2"]
    H = w2.shape[1]

    out = pl.pallas_call(
        returnnet_kernel,
        out_shape=jax.ShapeDtypeStruct((G, B, 1), jnp.float32),
        grid=(G,),
        in_specs=[
            pl.BlockSpec((None, B, D), lambda g: (g, 0, 0)),
            pl.BlockSpec((D + 8, H), lambda g: (0, 0)),   # resident across steps
            pl.BlockSpec((H, H), lambda g: (0, 0)),       # resident across steps
        ],
        out_specs=pl.BlockSpec((None, B, 1), lambda g: (g, 0, 0)),
        compiler_params=pltpu.CompilerParams(
            dimension_semantics=("parallel",)),
    )(x, w1p, w2)
    return out[0] if squeeze else out


def init_params(key, input_dim, hidden_dim):
    """PyTorch-style uniform fan-in init.

    Returns (kernel_params, ref_params).  The kernel gets:
      w1p: one (input_dim + 8, hidden) f32 operand (fc1 weight + all
           per-feature vectors),
      w2 : (hidden, hidden) bf16.
    The references get the same values in f32 (plus the fc1/fc2 biases, which
    the kernel drops because training-mode BN cancels them exactly).
    """
    ks = jax.random.split(key, 6)

    def linear(kw, kb, fan_in, fan_out):
        bound = 1.0 / jnp.sqrt(jnp.float32(fan_in))
        w = jax.random.uniform(kw, (fan_in, fan_out), jnp.float32, -bound, bound)
        b = jax.random.uniform(kb, (1, fan_out), jnp.float32, -bound, bound)
        return w, b

    w1, b1 = linear(ks[0], ks[1], input_dim, hidden_dim)
    w2, b2 = linear(ks[2], ks[3], hidden_dim, hidden_dim)
    w3, b3 = linear(ks[4], ks[5], hidden_dim, 1)

    g1 = jnp.ones((1, hidden_dim), jnp.float32)
    be1 = jnp.zeros((1, hidden_dim), jnp.float32)
    g2 = jnp.ones((1, hidden_dim), jnp.float32)
    be2 = jnp.zeros((1, hidden_dim), jnp.float32)

    # Combined operand: fc1 weight rows + 8 packed per-feature rows.
    w1p = jnp.zeros((input_dim + 8, hidden_dim), jnp.float32)
    w1p = w1p.at[:input_dim].set(w1)
    w1p = w1p.at[input_dim + 0].set(g1[0]).at[input_dim + 1].set(be1[0])
    w1p = w1p.at[input_dim + 2].set(g2[0]).at[input_dim + 3].set(be2[0])
    w1p = w1p.at[input_dim + 4].set(w3[:, 0])
    w1p = w1p.at[input_dim + 5].set(
        jnp.full((hidden_dim,), b3[0, 0], jnp.float32))

    w2_bf16 = w2.astype(jnp.bfloat16)

    kernel_params = {"w1p": w1p, "w2": w2_bf16}
    # References use the bf16-quantized matmul weights in f32 so tolerance
    # tests the semantics (bias drop, BN fusion), not quantization noise.
    ref_params = {
        "w1": w1.astype(jnp.bfloat16).astype(jnp.float32), "b1": b1,
        "g1": g1, "be1": be1,
        "w2": w2_bf16.astype(jnp.float32), "b2": b2,
        "g2": g2, "be2": be2,
        "w3": w3, "b3": b3,
    }
    return kernel_params, ref_params


def returnnet_reference_f32(x, p):
    """Exact PyTorch forward (training-mode BN, biased variance), all f32."""
    h = x @ p["w1"] + p["b1"]
    mu = h.mean(0, keepdims=True)
    var = ((h - mu) ** 2).mean(0, keepdims=True)
    h = (h - mu) / jnp.sqrt(var + EPS) * p["g1"] + p["be1"]
    h = h @ p["w2"] + p["b2"]
    mu = h.mean(0, keepdims=True)
    var = ((h - mu) ** 2).mean(0, keepdims=True)
    h = (h - mu) / jnp.sqrt(var + EPS) * p["g2"] + p["be2"]
    h = jnp.where(h > 0, h, NEG_SLOPE * h)
    return h @ p["w3"] + p["b3"]


def returnnet_reference_matched(x, p):
    """Same numerics as the kernel (bf16 MXU operands, f32 everywhere else)."""
    w1 = p["w1"].astype(jnp.bfloat16)
    w2 = p["w2"].astype(jnp.bfloat16)
    h = jnp.dot(x.astype(jnp.bfloat16), w1, preferred_element_type=jnp.float32)
    mu = h.mean(0, keepdims=True)
    var = jnp.maximum((h * h).mean(0, keepdims=True) - mu * mu, 0.0)
    s = p["g1"] * lax.rsqrt(var + EPS)
    h = h * s + (p["be1"] - mu * s)
    h = jnp.dot(h.astype(jnp.bfloat16), w2, preferred_element_type=jnp.float32)
    mu = h.mean(0, keepdims=True)
    var = jnp.maximum((h * h).mean(0, keepdims=True) - mu * mu, 0.0)
    s = p["g2"] * lax.rsqrt(var + EPS)
    h = h * s + (p["be2"] - mu * s)
    h = jnp.maximum(h, NEG_SLOPE * h)
    return jnp.sum(h * p["w3"][:, 0][None, :], axis=-1, keepdims=True) + p["b3"]


if __name__ == "__main__":
    INPUT_DIM = 16
    HIDDEN_DIM = 128   # PyTorch default is 512; kept small but lane-dense
    BATCH = 128        # bigger batch per call: amortizes launch/DMA latency
    GROUPS = 2         # independent BN batches -> "parallel" grid (v7x 2 TCs)

    key = jax.random.PRNGKey(0)
    kx, kp = jax.random.split(key)
    x = jax.random.normal(kx, (BATCH, INPUT_DIM), jnp.float32)
    kernel_params, ref_params = init_params(kp, INPUT_DIM, HIDDEN_DIM)

    # --- single BN batch (exact module semantics) ---
    out = returnnet_forward(x, kernel_params)
    out = jax.block_until_ready(out)
    assert out.shape == (BATCH, 1)

    ref_m = returnnet_reference_matched(x, ref_params)
    assert jnp.allclose(out, ref_m, atol=1e-3, rtol=1e-3), \
        "mismatch vs matched-precision JAX reference"

    ref_f32 = returnnet_reference_f32(x, ref_params)
    assert jnp.allclose(out, ref_f32, atol=5e-2, rtol=5e-2), \
        "mismatch vs exact-f32 reference"

    # --- grouped path: G independent BN batches on a parallel grid axis ---
    xg = x.reshape(GROUPS, BATCH // GROUPS, INPUT_DIM)
    outg = jax.block_until_ready(returnnet_forward(xg, kernel_params))
    assert outg.shape == (GROUPS, BATCH // GROUPS, 1)
    for g in range(GROUPS):
        ref_g = returnnet_reference_matched(xg[g], ref_params)
        assert jnp.allclose(outg[g], ref_g, atol=1e-3, rtol=1e-3), \
            f"group {g} mismatch vs matched-precision JAX reference"

    # TODO(synk): eval-mode BatchNorm (running stats) not implemented; kernel
    # assumes training-mode batch statistics, matching the module's default.
    print("KERNEL_OK")
</pallas_src>

<mosaic_0001>
module attributes {stable_mosaic.version = 11 : i64} {
  func.func @returnnet_kernel(%arg0: i32, %arg1: memref<1x128x16xf32, #tpu.memory_space<vmem>>, %arg2: memref<24x128xf32, #tpu.memory_space<vmem>>, %arg3: memref<128x128xbf16, #tpu.memory_space<vmem>>, %arg4: memref<1x128x1xf32, #tpu.memory_space<vmem>>) attributes {dimension_semantics = [#tpu.dimension_semantics<parallel>], iteration_bounds = array<i64: 1>, scalar_prefetch = 0 : i64, scratch_operands = 0 : i64, tpu.core_type = #tpu.core_type<tc>, window_params = [{transform_indices = @transform_0, window_bounds = array<i64: 1, 128, 16>}, {pipeline_mode = #tpu.pipeline_mode<synchronous>, transform_indices = @transform_1, window_bounds = array<i64: 24, 128>}, {pipeline_mode = #tpu.pipeline_mode<synchronous>, transform_indices = @transform_2, window_bounds = array<i64: 128, 128>}, {transform_indices = @transform_3, window_bounds = array<i64: 1, 128, 1>}]} {
    %c0 = arith.constant 0 : index
    %c0_0 = arith.constant 0 : index
    %0 = vector.load %arg2[%c0, %c0_0] : memref<24x128xf32, #tpu.memory_space<vmem>>, vector<16x128xf32>
    %1 = arith.truncf %0 : vector<16x128xf32> to vector<16x128xbf16>
    %c16 = arith.constant 16 : index
    %c0_1 = arith.constant 0 : index
    %2 = vector.load %arg2[%c16, %c0_1] : memref<24x128xf32, #tpu.memory_space<vmem>>, vector<8x128xf32>
    %3 = vector.extract_strided_slice %2 {offsets = [0, 0], sizes = [1, 128], strides = [1, 1]} : vector<8x128xf32> to vector<1x128xf32>
    %4 = vector.extract_strided_slice %2 {offsets = [1, 0], sizes = [1, 128], strides = [1, 1]} : vector<8x128xf32> to vector<1x128xf32>
    %5 = vector.extract_strided_slice %2 {offsets = [2, 0], sizes = [1, 128], strides = [1, 1]} : vector<8x128xf32> to vector<1x128xf32>
    %6 = vector.extract_strided_slice %2 {offsets = [3, 0], sizes = [1, 128], strides = [1, 1]} : vector<8x128xf32> to vector<1x128xf32>
    %7 = vector.extract_strided_slice %2 {offsets = [4, 0], sizes = [1, 128], strides = [1, 1]} : vector<8x128xf32> to vector<1x128xf32>
    %8 = vector.extract_strided_slice %2 {offsets = [5, 0], sizes = [1, 1], strides = [1, 1]} : vector<8x128xf32> to vector<1x1xf32>
    %c0_2 = arith.constant 0 : index
    %c0_3 = arith.constant 0 : index
    %c0_4 = arith.constant 0 : index
    %9 = vector.load %arg1[%c0_2, %c0_3, %c0_4] : memref<1x128x16xf32, #tpu.memory_space<vmem>>, vector<1x128x16xf32>
    %10 = vector.shape_cast %9 : vector<1x128x16xf32> to vector<128x16xf32>
    %11 = arith.truncf %10 : vector<128x16xf32> to vector<128x16xbf16>
    %cst = arith.constant dense<0.000000e+00> : vector<128x128xf32>
    %12 = tpu.matmul %11, %1, %cst {dimension_numbers = #tpu.dot_dimension_numbers<[1], [0], [0], [1], [0, 0, 1, 1], [], []>} : vector<128x16xbf16>, vector<16x128xbf16>, vector<128x128xf32> -> vector<128x128xf32>
    %cst_5 = arith.constant dense<0.000000e+00> : vector<128xf32>
    %13 = vector.multi_reduction <add>, %12, %cst_5 [0] : vector<128x128xf32> to vector<128xf32>
    %14 = vector.shape_cast %13 : vector<128xf32> to vector<1x128xf32>
    %cst_6 = arith.constant 1.280000e+02 : f32
    %15 = vector.broadcast %cst_6 : f32 to vector<1x128xf32>
    %16 = arith.divf %14, %15 : vector<1x128xf32>
    %17 = arith.mulf %12, %12 : vector<128x128xf32>
    %cst_7 = arith.constant dense<0.000000e+00> : vector<128xf32>
    %18 = vector.multi_reduction <add>, %17, %cst_7 [0] : vector<128x128xf32> to vector<128xf32>
    %19 = vector.shape_cast %18 : vector<128xf32> to vector<1x128xf32>
    %cst_8 = arith.constant 1.280000e+02 : f32
    %20 = vector.broadcast %cst_8 : f32 to vector<1x128xf32>
    %21 = arith.divf %19, %20 : vector<1x128xf32>
    %22 = arith.mulf %16, %16 : vector<1x128xf32>
    %23 = arith.subf %21, %22 : vector<1x128xf32>
    %cst_9 = arith.constant 0.000000e+00 : f32
    %24 = vector.broadcast %cst_9 : f32 to vector<1x128xf32>
    %25 = arith.maximumf %23, %24 : vector<1x128xf32>
    %cst_10 = arith.constant 9.99999974E-6 : f32
    %26 = vector.broadcast %cst_10 : f32 to vector<1x128xf32>
    %27 = arith.addf %25, %26 : vector<1x128xf32>
    %28 = math.rsqrt %27 : vector<1x128xf32>
    %29 = arith.mulf %3, %28 : vector<1x128xf32>
    %30 = vector.broadcast %29 : vector<1x128xf32> to vector<128x128xf32>
    %31 = arith.mulf %12, %30 : vector<128x128xf32>
    %32 = arith.mulf %16, %29 : vector<1x128xf32>
    %33 = arith.subf %4, %32 : vector<1x128xf32>
    %34 = vector.broadcast %33 : vector<1x128xf32> to vector<128x128xf32>
    %35 = arith.addf %31, %34 : vector<128x128xf32>
    %36 = arith.truncf %35 : vector<128x128xf32> to vector<128x128xbf16>
    %c0_11 = arith.constant 0 : index
    %c0_12 = arith.constant 0 : index
    %37 = vector.load %arg3[%c0_11, %c0_12] : memref<128x128xbf16, #tpu.memory_space<vmem>>, vector<128x128xbf16>
    %cst_13 = arith.constant dense<0.000000e+00> : vector<128x128xf32>
    %38 = tpu.matmul %36, %37, %cst_13 {dimension_numbers = #tpu.dot_dimension_numbers<[1], [0], [0], [1], [0, 0, 1, 1], [], []>} : vector<128x128xbf16>, vector<128x128xbf16>, vector<128x128xf32> -> vector<128x128xf32>
    %cst_14 = arith.constant dense<0.000000e+00> : vector<128xf32>
    %39 = vector.multi_reduction <add>, %38, %cst_14 [0] : vector<128x128xf32> to vector<128xf32>
    %40 = vector.shape_cast %39 : vector<128xf32> to vector<1x128xf32>
    %cst_15 = arith.constant 1.280000e+02 : f32
    %41 = vector.broadcast %cst_15 : f32 to vector<1x128xf32>
    %42 = arith.divf %40, %41 : vector<1x128xf32>
    %43 = arith.mulf %38, %38 : vector<128x128xf32>
    %cst_16 = arith.constant dense<0.000000e+00> : vector<128xf32>
    %44 = vector.multi_reduction <add>, %43, %cst_16 [0] : vector<128x128xf32> to vector<128xf32>
    %45 = vector.shape_cast %44 : vector<128xf32> to vector<1x128xf32>
    %cst_17 = arith.constant 1.280000e+02 : f32
    %46 = vector.broadcast %cst_17 : f32 to vector<1x128xf32>
    %47 = arith.divf %45, %46 : vector<1x128xf32>
    %48 = arith.mulf %42, %42 : vector<1x128xf32>
    %49 = arith.subf %47, %48 : vector<1x128xf32>
    %cst_18 = arith.constant 0.000000e+00 : f32
    %50 = vector.broadcast %cst_18 : f32 to vector<1x128xf32>
    %51 = arith.maximumf %49, %50 : vector<1x128xf32>
    %cst_19 = arith.constant 9.99999974E-6 : f32
    %52 = vector.broadcast %cst_19 : f32 to vector<1x128xf32>
    %53 = arith.addf %51, %52 : vector<1x128xf32>
    %54 = math.rsqrt %53 : vector<1x128xf32>
    %55 = arith.mulf %5, %54 : vector<1x128xf32>
    %56 = vector.broadcast %55 : vector<1x128xf32> to vector<128x128xf32>
    %57 = arith.mulf %38, %56 : vector<128x128xf32>
    %58 = arith.mulf %42, %55 : vector<1x128xf32>
    %59 = arith.subf %6, %58 : vector<1x128xf32>
    %60 = vector.broadcast %59 : vector<1x128xf32> to vector<128x128xf32>
    %61 = arith.addf %57, %60 : vector<128x128xf32>
    %cst_20 = arith.constant 0.00999999977 : f32
    %62 = vector.broadcast %cst_20 : f32 to vector<128x128xf32>
    %63 = arith.mulf %62, %61 : vector<128x128xf32>
    %64 = arith.maximumf %61, %63 : vector<128x128xf32>
    %65 = vector.broadcast %7 : vector<1x128xf32> to vector<128x128xf32>
    %66 = arith.mulf %64, %65 : vector<128x128xf32>
    %cst_21 = arith.constant dense<0.000000e+00> : vector<128xf32>
    %67 = vector.multi_reduction <add>, %66, %cst_21 [1] : vector<128x128xf32> to vector<128xf32>
    %68 = vector.shape_cast %67 : vector<128xf32> to vector<128x1xf32>
    %69 = vector.broadcast %8 : vector<1x1xf32> to vector<128x1xf32>
    %70 = arith.addf %68, %69 : vector<128x1xf32>
    %c0_22 = arith.constant 0 : index
    %c0_23 = arith.constant 0 : index
    %c0_24 = arith.constant 0 : index
    %71 = vector.load %arg4[%c0_22, %c0_23, %c0_24] : memref<1x128x1xf32, #tpu.memory_space<vmem>>, vector<1x128x1xf32>
    %72 = vector.shape_cast %71 : vector<1x128x1xf32> to vector<128x1xf32>
    %73 = vector.shape_cast %70 : vector<128x1xf32> to vector<1x128x1xf32>
    tpu.vector_store %arg4[%c0_22, %c0_23, %c0_24], %73 {strides = array<i32>} : memref<1x128x1xf32, #tpu.memory_space<vmem>>, vector<1x128x1xf32>,
    return
  }
  func.func @transform_0(%arg0: i32) -> (i32, i32, i32) {
    %c0_i32 = arith.constant 0 : i32
    %c0_i32_0 = arith.constant 0 : i32
    %c0_i32_1 = arith.constant 0 : i32
    return %arg0, %c0_i32, %c0_i32_0 : i32, i32, i32
  }
  func.func @transform_1(%arg0: i32) -> (i32, i32) {
    %c0_i32 = arith.constant 0 : i32
    %c0_i32_0 = arith.constant 0 : i32
    %c0_i32_1 = arith.constant 0 : i32
    return %c0_i32, %c0_i32_0 : i32, i32
  }
  func.func @transform_2(%arg0: i32) -> (i32, i32) {
    %c0_i32 = arith.constant 0 : i32
    %c0_i32_0 = arith.constant 0 : i32
    %c0_i32_1 = arith.constant 0 : i32
    return %c0_i32, %c0_i32_0 : i32, i32
  }
  func.func @transform_3(%arg0: i32) -> (i32, i32, i32) {
    %c0_i32 = arith.constant 0 : i32
    %c0_i32_0 = arith.constant 0 : i32
    %c0_i32_1 = arith.constant 0 : i32
    return %arg0, %c0_i32, %c0_i32_0 : i32, i32, i32
  }
}

</mosaic_0001>

<llo_original>
// kernel: tpu_custom_call.1
$region0: #{tpu_custom_call.1}
  #allocation0 [shape = 'u32[]', space=smem, size = 0x4, offset = 0x4, fixed_abs, tag = 'smem constant byte address 0x4 - core index']
  #allocation1 [shape = 'u32[144,128]{1,0:T(1,128)}', space=vmem, size = 0x12000, scoped, tag = 'internal scratch']
  %s0 = inlined_call_operand.vmem [shape: f32[1,128,16], index: 0, kind: input, shape index: {}]
  %s1 = inlined_call_operand.vmem [shape: f32[24,128], index: 1, kind: input, shape index: {}]
  %s2 = inlined_call_operand.vmem [shape: bf16[128,128], index: 2, kind: input, shape index: {}]
  %s3 = inlined_call_operand.vmem [shape: f32[1,128,1], index: 3, kind: output, shape index: {}]
  %s4 = sld [smem:[#allocation0]]
  $region22: #{tpu_custom_call.1} parent=0
    _
  %s6 = ssub.s32 1, %s4
  %s7 = scalar_select 0, %s6, %s4
  // Predicated region
  $region2: #{tpu_custom_call.1} parent=0 // pred_check
    _
  $region3: #{tpu_custom_call.1} parent=0 // pred_check_branch
    %9 = sbr.rel (0) target = $region5
  $region4: #{tpu_custom_call.1} parent=0 // pred_region
    _
  $region5: #{tpu_custom_call.1} parent=0 // pred_fallthru
    _
  // Predicated region
  $region6: #{tpu_custom_call.1} parent=0 // pred_check
    _
  $region7: #{tpu_custom_call.1} parent=0 // pred_check_branch
    %11 = sbr.rel (0) target = $region9
  $region8: #{tpu_custom_call.1} parent=0 // pred_region
    _
  $region9: #{tpu_custom_call.1} parent=0 // pred_fallthru
    _
  // Predicated region
  $region10: #{tpu_custom_call.1} parent=0 // pred_check
    _
  $region11: #{tpu_custom_call.1} parent=0 // pred_check_branch
    %13 = sbr.rel (0) target = $region13
  $region12: #{tpu_custom_call.1} parent=0 // pred_region
    _
  $region13: #{tpu_custom_call.1} parent=0 // pred_fallthru
    _
  %v15 = vld [vmem:[%s1] sm:$0xff]
  %v16 = vld [vmem:[%s1 + $0x8] sm:$0xff]
  %v17 = vpack.c.bf16 %v16, %v15
  %v18 = vld [vmem:[%s1 + $0x10] sm:$0xff]
  %v19 = vld [vmem:[%s0] sm:$0xff]
  %v20 = vld [vmem:[%s0 + $0x8] sm:$0xff]
  %v21 = vld [vmem:[%s0 + $0x10] sm:$0xff]
  %v22 = vld [vmem:[%s0 + $0x18] sm:$0xff]
  %v23 = vld [vmem:[%s0 + $0x20] sm:$0xff]
  %v24 = vld [vmem:[%s0 + $0x28] sm:$0xff]
  %v25 = vld [vmem:[%s0 + $0x30] sm:$0xff]
  %v26 = vld [vmem:[%s0 + $0x38] sm:$0xff]
  %v27 = vld [vmem:[%s0 + $0x40] sm:$0xff]
  %v28 = vld [vmem:[%s0 + $0x48] sm:$0xff]
  %v29 = vld [vmem:[%s0 + $0x50] sm:$0xff]
  %v30 = vld [vmem:[%s0 + $0x58] sm:$0xff]
  %v31 = vld [vmem:[%s0 + $0x60] sm:$0xff]
  %v32 = vld [vmem:[%s0 + $0x68] sm:$0xff]
  %v33 = vld [vmem:[%s0 + $0x70] sm:$0xff]
  %v34 = vld [vmem:[%s0 + $0x78] sm:$0xff]
  %v35 = vpack.c.bf16 %v20, %v19
  %v36 = vpack.c.bf16 %v22, %v21
  %v37 = vpack.c.bf16 %v24, %v23
  %v38 = vpack.c.bf16 %v26, %v25
  %v39 = vpack.c.bf16 %v28, %v27
  %v40 = vpack.c.bf16 %v30, %v29
  %v41 = vpack.c.bf16 %v32, %v31
  %v42 = vpack.c.bf16 %v34, %v33
  %vm43 = vcmask 130048
  %v45 = vsel %vm43, %v35, 0
  %v48 = vsel %vm43, %v36, 0
  %v51 = vsel %vm43, %v37, 0
  %v54 = vsel %vm43, %v38, 0
  %v57 = vsel %vm43, %v39, 0
  %v60 = vsel %vm43, %v40, 0
  %v63 = vsel %vm43, %v41, 0
  %v66 = vsel %vm43, %v42, 0
  %68 = vmatprep.subr.bf16.mxu0 0
  %69 = vmatpush1.bf16.msra.mxu0 %v17
  %70 = vmatprep.subr.bf16.mxu0 0
  %71 = vmatpush1.bf16.msra.mxu0 0
  %72 = vmatprep.subr.bf16.mxu0 0
  %73 = vmatpush1.bf16.msra.mxu0 0
  %74 = vmatprep.subr.bf16.mxu0 0
  %75 = vmatpush1.bf16.msra.mxu0 0
  %76 = vmatprep.subr.bf16.mxu0 0
  %77 = vmatpush1.bf16.msra.mxu0 0
  %78 = vmatprep.subr.bf16.mxu0 0
  %79 = vmatpush1.bf16.msra.mxu0 0
  %80 = vmatprep.subr.bf16.mxu0 0
  %81 = vmatpush1.bf16.msra.mxu0 0
  %82 = vmatprep.subr.bf16.mxu0 0
  %83 = vmatpush1.bf16.msra.mxu0 0
  %84 = vmatprep.subr.bf16.mxu0 0
  %85 = vmatpush1.bf16.msra.mxu0 0
  %86 = vmatprep.subr.bf16.mxu0 0
  %87 = vmatpush1.bf16.msra.mxu0 0
  %88 = vmatprep.subr.bf16.mxu0 0
  %89 = vmatpush1.bf16.msra.mxu0 0
  %90 = vmatprep.subr.bf16.mxu0 0
  %91 = vmatpush1.bf16.msra.mxu0 0
  %92 = vmatprep.subr.bf16.mxu0 0
  %93 = vmatpush1.bf16.msra.mxu0 0
  %94 = vmatprep.subr.bf16.mxu0 0
  %95 = vmatpush1.bf16.msra.mxu0 0
  %96 = vmatprep.subr.bf16.mxu0 0
  %97 = vmatpush1.bf16.msra.mxu0 0
  %98 = vmatprep.subr.bf16.mxu0 0
  %99 = vmatpush1.bf16.msra.mxu0 0
  %100 = vmatprep.mubr.bf16.mxu0 0
  %101 = vmatmul.mubr.bf16.gmra.mrb[0].mxu0 %v45
  %v102 = vpop.f32.mrb[0].mxu0
  %v103 = vadd.f32 0.0, %v102
  %v104 = vpop.f32.mrb[0].mxu0
  %v105 = vpop.f32.mrb[0].mxu0
  %v106 = vadd.f32 0.0, %v105
  %v107 = vpop.f32.mrb[0].mxu0
  %108 = vmatprep.mubr.bf16.mxu0 0
  %109 = vmatmul.mubr.bf16.gmra.mrb[0].mxu0 %v48
  %v110 = vpop.f32.mrb[0].mxu0
  %v111 = vadd.f32 0.0, %v110
  %v112 = vpop.f32.mrb[0].mxu0
  %v113 = vpop.f32.mrb[0].mxu0
  %v114 = vadd.f32 0.0, %v113
  %v115 = vpop.f32.mrb[0].mxu0
  %116 = vmatprep.mubr.bf16.mxu0 0
  %117 = vmatmul.mubr.bf16.gmra.mrb[0].mxu0 %v51
  %v118 = vpop.f32.mrb[0].mxu0
  %v119 = vadd.f32 0.0, %v118
  %v120 = vpop.f32.mrb[0].mxu0
  %v121 = vpop.f32.mrb[0].mxu0
  %v122 = vadd.f32 0.0, %v121
  %v123 = vpop.f32.mrb[0].mxu0
  %124 = vmatprep.mubr.bf16.mxu0 0
  %125 = vmatmul.mubr.bf16.gmra.mrb[0].mxu0 %v54
  %v126 = vpop.f32.mrb[0].mxu0
  %v127 = vadd.f32 0.0, %v126
  %v128 = vpop.f32.mrb[0].mxu0
  %v129 = vpop.f32.mrb[0].mxu0
  %v130 = vadd.f32 0.0, %v129
  %v131 = vpop.f32.mrb[0].mxu0
  %132 = vmatprep.mubr.bf16.mxu0 0
  %133 = vmatmul.mubr.bf16.gmra.mrb[0].mxu0 %v57
  %v134 = vpop.f32.mrb[0].mxu0
  %v135 = vadd.f32 0.0, %v134
  %v136 = vpop.f32.mrb[0].mxu0
  %v137 = vpop.f32.mrb[0].mxu0
  %v138 = vadd.f32 0.0, %v137
  %v139 = vpop.f32.mrb[0].mxu0
  %140 = vmatprep.mubr.bf16.mxu0 0
  %141 = vmatmul.mubr.bf16.gmra.mrb[0].mxu0 %v60
  %v142 = vpop.f32.mrb[0].mxu0
  %v143 = vadd.f32 0.0, %v142
  %v144 = vpop.f32.mrb[0].mxu0
  %v145 = vpop.f32.mrb[0].mxu0
  %v146 = vadd.f32 0.0, %v145
  %v147 = vpop.f32.mrb[0].mxu0
  %148 = vmatprep.mubr.bf16.mxu0 0
  %149 = vmatmul.mubr.bf16.gmra.mrb[0].mxu0 %v63
  %v150 = vpop.f32.mrb[0].mxu0
  %v151 = vadd.f32 0.0, %v150
  %v152 = vpop.f32.mrb[0].mxu0
  %v153 = vpop.f32.mrb[0].mxu0
  %v154 = vadd.f32 0.0, %v153
  %v155 = vpop.f32.mrb[0].mxu0
  %156 = vmatprep.mubr.bf16.mxu0 0
  %157 = vmatmul.mubr.bf16.gmra.mrb[0].mxu0 %v66
  %v158 = vpop.f32.mrb[0].mxu0
  %v159 = vadd.f32 0.0, %v158
  %v160 = vpop.f32.mrb[0].mxu0
  %v161 = vpop.f32.mrb[0].mxu0
  %v162 = vadd.f32 0.0, %v161
  %v163 = vpop.f32.mrb[0].mxu0
  %164 = vdwg.mxu0
  %v165 = vadd.f32 %v103, %v106
  %v166 = vadd.f32 %v165, %v111
  %v167 = vadd.f32 %v166, %v114
  %v168 = vadd.f32 %v167, %v119
  %v169 = vadd.f32 %v168, %v122
  %v170 = vadd.f32 %v169, %v127
  %v171 = vadd.f32 %v170, %v130
  %v172 = vadd.f32 %v171, %v135
  %v173 = vadd.f32 %v172, %v138
  %v174 = vadd.f32 %v173, %v143
  %v175 = vadd.f32 %v174, %v146
  %v176 = vadd.f32 %v175, %v151
  %v177 = vadd.f32 %v176, %v154
  %v178 = vadd.f32 %v177, %v159
  %v179 = vadd.f32 %v178, %v162
  %v180 = vrot.slane %v179, 4
  %v181 = vadd.f32 %v179, %v180
  %v182 = vrot.slane %v181, 2
  %v183 = vadd.f32 %v181, %v182
  %v184 = vrot.slane %v183, 1
  %v185 = vadd.f32 %v183, %v184
  %v186 = vrcp.pop 128.0
  %v187 = vmul.f32 %v185, %v186
  %v188 = vmul.f32 %v103, %v103
  %v189 = vmul.f32 %v106, %v106
  %v190 = vmul.f32 %v111, %v111
  %v191 = vmul.f32 %v114, %v114
  %v192 = vmul.f32 %v119, %v119
  %v193 = vmul.f32 %v122, %v122
  %v194 = vmul.f32 %v127, %v127
  %v195 = vmul.f32 %v130, %v130
  %v196 = vmul.f32 %v135, %v135
  %v197 = vmul.f32 %v138, %v138
  %v198 = vmul.f32 %v143, %v143
  %v199 = vmul.f32 %v146, %v146
  %v200 = vmul.f32 %v151, %v151
  %v201 = vmul.f32 %v154, %v154
  %v202 = vmul.f32 %v159, %v159
  %v203 = vmul.f32 %v162, %v162
  %v204 = vadd.f32 %v188, %v189
  %v205 = vadd.f32 %v204, %v190
  %v206 = vadd.f32 %v205, %v191
  %v207 = vadd.f32 %v206, %v192
  %v208 = vadd.f32 %v207, %v193
  %v209 = vadd.f32 %v208, %v194
  %v210 = vadd.f32 %v209, %v195
  %v211 = vadd.f32 %v210, %v196
  %v212 = vadd.f32 %v211, %v197
  %v213 = vadd.f32 %v212, %v198
  %v214 = vadd.f32 %v213, %v199
  %v215 = vadd.f32 %v214, %v200
  %v216 = vadd.f32 %v215, %v201
  %v217 = vadd.f32 %v216, %v202
  %v218 = vadd.f32 %v217, %v203
  %v219 = vrot.slane %v218, 4
  %v220 = vadd.f32 %v218, %v219
  %v221 = vrot.slane %v220, 2
  %v222 = vadd.f32 %v220, %v221
  %v223 = vrot.slane %v222, 1
  %v224 = vadd.f32 %v222, %v223
  %v225 = vmul.f32 %v224, %v186
  %v226 = vmul.f32 %v187, %v187
  %v227 = vsub.f32 %v225, %v226
  %v228 = vmax.f32 %v227, 0.0
  %v229 = vadd.f32 %v228, 1e-05
  %v230 = vrsqrt.pop %v229
  %v231 = vmul.f32 %v18, %v230
  %v232 = vlaneseq
  %v233 = vshrl.u32 %v232, 7
  %v234 = vsub.s32 0, %v233
  %v235 = vrot.slane %v231, %v234
  %v236 = vmul.f32 %v103, %v235
  %v237 = vmul.f32 %v106, %v235
  %v238 = vmul.f32 %v111, %v235
  %v239 = vmul.f32 %v114, %v235
  %v240 = vmul.f32 %v119, %v235
  %v241 = vmul.f32 %v122, %v235
  %v242 = vmul.f32 %v127, %v235
  %v243 = vmul.f32 %v130, %v235
  %v244 = vmul.f32 %v135, %v235
  %v245 = vmul.f32 %v138, %v235
  %v246 = vmul.f32 %v143, %v235
  %v247 = vmul.f32 %v146, %v235
  %v248 = vmul.f32 %v151, %v235
  %v249 = vmul.f32 %v154, %v235
  %v250 = vmul.f32 %v159, %v235
  %v251 = vmul.f32 %v162, %v235
  %v252 = vmul.f32 %v187, %v231
  %v254 = vrot.slane %v252, 7
  %v256 = vsub.f32 %v18, %v254
  %v257 = vlaneseq
  %v258 = vshrl.u32 %v257, 7
  %v259 = vsub.s32 1, %v258
  %v260 = vrot.slane %v256, %v259
  %v261 = vadd.f32 %v236, %v260
  %v262 = vadd.f32 %v237, %v260
  %v263 = vadd.f32 %v238, %v260
  %v264 = vadd.f32 %v239, %v260
  %v265 = vadd.f32 %v240, %v260
  %v266 = vadd.f32 %v241, %v260
  %v267 = vadd.f32 %v242, %v260
  %v268 = vadd.f32 %v243, %v260
  %v269 = vadd.f32 %v244, %v260
  %v270 = vadd.f32 %v245, %v260
  %v271 = vadd.f32 %v246, %v260
  %v272 = vadd.f32 %v247, %v260
  %v273 = vadd.f32 %v248, %v260
  %v274 = vadd.f32 %v249, %v260
  %v275 = vadd.f32 %v250, %v260
  %v276 = vadd.f32 %v251, %v260
  %v277 = vpack.c.bf16 %v262, %v261
  %v278 = vpack.c.bf16 %v264, %v263
  %v279 = vpack.c.bf16 %v266, %v265
  %v280 = vpack.c.bf16 %v268, %v267
  %v281 = vpack.c.bf16 %v270, %v269
  %v282 = vpack.c.bf16 %v272, %v271
  %v283 = vpack.c.bf16 %v274, %v273
  %v284 = vpack.c.bf16 %v276, %v275
  %v285 = vld [vmem:[%s2] sm:$0xf]
  %v286 = vld [vmem:[%s2 + $0x4] sm:$0xf]
  %v287 = vld [vmem:[%s2 + $0x8] sm:$0xf]
  %v288 = vld [vmem:[%s2 + $0xc] sm:$0xf]
  %v289 = vld [vmem:[%s2 + $0x10] sm:$0xf]
  %v290 = vld [vmem:[%s2 + $0x14] sm:$0xf]
  %v291 = vld [vmem:[%s2 + $0x18] sm:$0xf]
  %v292 = vld [vmem:[%s2 + $0x1c] sm:$0xf]
  %v293 = vld [vmem:[%s2 + $0x20] sm:$0xf]
  %v294 = vld [vmem:[%s2 + $0x24] sm:$0xf]
  %v295 = vld [vmem:[%s2 + $0x28] sm:$0xf]
  %v296 = vld [vmem:[%s2 + $0x2c] sm:$0xf]
  %v297 = vld [vmem:[%s2 + $0x30] sm:$0xf]
  %v298 = vld [vmem:[%s2 + $0x34] sm:$0xf]
  %v299 = vld [vmem:[%s2 + $0x38] sm:$0xf]
  %v300 = vld [vmem:[%s2 + $0x3c] sm:$0xf]
  %v317 = vunpack.c.l.b16 %v285
  %v318 = vunpack.c.l.b16 %v286
  %v319 = vunpack.c.l.b16 %v287
  %v320 = vunpack.c.l.b16 %v288
  %v321 = vunpack.c.l.b16 %v289
  %v322 = vunpack.c.l.b16 %v290
  %v323 = vunpack.c.l.b16 %v291
  %v324 = vunpack.c.l.b16 %v292
  %v325 = vunpack.c.l.b16 %v293
  %v326 = vunpack.c.l.b16 %v294
  %v327 = vunpack.c.l.b16 %v295
  %v328 = vunpack.c.l.b16 %v296
  %v329 = vunpack.c.l.b16 %v297
  %v330 = vunpack.c.l.b16 %v298
  %v331 = vunpack.c.l.b16 %v299
  %v332 = vunpack.c.l.b16 %v300
  %v333 = vpack.c.b16 %v318, %v317
  %v334 = vpack.c.b16 %v320, %v319
  %v335 = vpack.c.b16 %v322, %v321
  %v336 = vpack.c.b16 %v324, %v323
  %v337 = vpack.c.b16 %v326, %v325
  %v338 = vpack.c.b16 %v328, %v327
  %v339 = vpack.c.b16 %v330, %v329
  %v340 = vpack.c.b16 %v332, %v331
  %349 = vmatprep.subr.bf16.mxu0 0
  %350 = vmatpush1.bf16.msra.mxu0 %v333
  %351 = vmatprep.subr.bf16.mxu0 0
  %352 = vmatpush1.bf16.msra.mxu0 %v334
  %353 = vmatprep.subr.bf16.mxu0 0
  %354 = vmatpush1.bf16.msra.mxu0 %v335
  %355 = vmatprep.subr.bf16.mxu0 0
  %356 = vmatpush1.bf16.msra.mxu0 %v336
  %357 = vmatprep.subr.bf16.mxu0 0
  %358 = vmatpush1.bf16.msra.mxu0 %v337
  %359 = vmatprep.subr.bf16.mxu0 0
  %360 = vmatpush1.bf16.msra.mxu0 %v338
  %361 = vmatprep.subr.bf16.mxu0 0
  %362 = vmatpush1.bf16.msra.mxu0 %v339
  %363 = vmatprep.subr.bf16.mxu0 0
  %364 = vmatpush1.bf16.msra.mxu0 %v340
  %365 = vmatprep.subr.bf16.mxu0 0
  %366 = vmatpush1.bf16.msra.mxu0 0
  %367 = vmatprep.subr.bf16.mxu0 0
  %368 = vmatpush1.bf16.msra.mxu0 0
  %369 = vmatprep.subr.bf16.mxu0 0
  %370 = vmatpush1.bf16.msra.mxu0 0
  %371 = vmatprep.subr.bf16.mxu0 0
  %372 = vmatpush1.bf16.msra.mxu0 0
  %373 = vmatprep.subr.bf16.mxu0 0
  %374 = vmatpush1.bf16.msra.mxu0 0
  %375 = vmatprep.subr.bf16.mxu0 0
  %376 = vmatpush1.bf16.msra.mxu0 0
  %377 = vmatprep.subr.bf16.mxu0 0
  %378 = vmatpush1.bf16.msra.mxu0 0
  %379 = vmatprep.subr.bf16.mxu0 0
  %380 = vmatpush1.bf16.msra.mxu0 0
  %381 = vmatprep.mubr.bf16.mxu0 0
  %382 = vmatmul.mubr.bf16.gmra.mrb[0].mxu0 %v277
  %v383 = vpop.f32.mrb[0].mxu0
  %v384 = vadd.f32 0.0, %v383
  %v385 = vpop.f32.mrb[0].mxu0
  %v386 = vpop.f32.mrb[0].mxu0
  %v387 = vadd.f32 0.0, %v386
  %v388 = vpop.f32.mrb[0].mxu0
  %389 = vmatprep.mubr.bf16.mxu0 0
  %390 = vmatmul.mubr.bf16.gmra.mrb[0].mxu0 %v278
  %v391 = vpop.f32.mrb[0].mxu0
  %v392 = vadd.f32 0.0, %v391
  %v393 = vpop.f32.mrb[0].mxu0
  %v394 = vpop.f32.mrb[0].mxu0
  %v395 = vadd.f32 0.0, %v394
  %v396 = vpop.f32.mrb[0].mxu0
  %397 = vmatprep.mubr.bf16.mxu0 0
  %398 = vmatmul.mubr.bf16.gmra.mrb[0].mxu0 %v279
  %v399 = vpop.f32.mrb[0].mxu0
  %v400 = vadd.f32 0.0, %v399
  %v401 = vpop.f32.mrb[0].mxu0
  %v402 = vpop.f32.mrb[0].mxu0
  %v403 = vadd.f32 0.0, %v402
  %v404 = vpop.f32.mrb[0].mxu0
  %405 = vmatprep.mubr.bf16.mxu0 0
  %406 = vmatmul.mubr.bf16.gmra.mrb[0].mxu0 %v280
  %v407 = vpop.f32.mrb[0].mxu0
  %v408 = vadd.f32 0.0, %v407
  %v409 = vpop.f32.mrb[0].mxu0
  %v410 = vpop.f32.mrb[0].mxu0
  %v411 = vadd.f32 0.0, %v410
  %v412 = vpop.f32.mrb[0].mxu0
  %413 = vmatprep.mubr.bf16.mxu0 0
  %414 = vmatmul.mubr.bf16.gmra.mrb[0].mxu0 %v281
  %v415 = vpop.f32.mrb[0].mxu0
  %v416 = vadd.f32 0.0, %v415
  %v417 = vpop.f32.mrb[0].mxu0
  %v418 = vpop.f32.mrb[0].mxu0
  %v419 = vadd.f32 0.0, %v418
  %v420 = vpop.f32.mrb[0].mxu0
  %421 = vmatprep.mubr.bf16.mxu0 0
  %422 = vmatmul.mubr.bf16.gmra.mrb[0].mxu0 %v282
  %v423 = vpop.f32.mrb[0].mxu0
  %v424 = vadd.f32 0.0, %v423
  %v425 = vpop.f32.mrb[0].mxu0
  %v426 = vpop.f32.mrb[0].mxu0
  %v427 = vadd.f32 0.0, %v426
  %v428 = vpop.f32.mrb[0].mxu0
  %429 = vmatprep.mubr.bf16.mxu0 0
  %430 = vmatmul.mubr.bf16.gmra.mrb[0].mxu0 %v283
  %v431 = vpop.f32.mrb[0].mxu0
  %v432 = vadd.f32 0.0, %v431
  %v433 = vpop.f32.mrb[0].mxu0
  %v434 = vpop.f32.mrb[0].mxu0
  %v435 = vadd.f32 0.0, %v434
  %v436 = vpop.f32.mrb[0].mxu0
  %437 = vmatprep.mubr.bf16.mxu0 0
  %438 = vmatmul.mubr.bf16.gmra.mrb[0].mxu0 %v284
  %v439 = vpop.f32.mrb[0].mxu0
  %v440 = vadd.f32 0.0, %v439
  %v441 = vpop.f32.mrb[0].mxu0
  %v442 = vpop.f32.mrb[0].mxu0
  %v443 = vadd.f32 0.0, %v442
  %v444 = vpop.f32.mrb[0].mxu0
  %445 = vdwg.mxu0
  %v446 = vadd.f32 %v384, %v387
  %v447 = vadd.f32 %v446, %v392
  %v448 = vadd.f32 %v447, %v395
  %v449 = vadd.f32 %v448, %v400
  %v450 = vadd.f32 %v449, %v403
  %v451 = vadd.f32 %v450, %v408
  %v452 = vadd.f32 %v451, %v411
  %v453 = vadd.f32 %v452, %v416
  %v454 = vadd.f32 %v453, %v419
  %v455 = vadd.f32 %v454, %v424
  %v456 = vadd.f32 %v455, %v427
  %v457 = vadd.f32 %v456, %v432
  %v458 = vadd.f32 %v457, %v435
  %v459 = vadd.f32 %v458, %v440
  %v460 = vadd.f32 %v459, %v443
  %v461 = vrot.slane %v460, 4
  %v462 = vadd.f32 %v460, %v461
  %v463 = vrot.slane %v462, 2
  %v464 = vadd.f32 %v462, %v463
  %v465 = vrot.slane %v464, 1
  %v466 = vadd.f32 %v464, %v465
  %v467 = vmul.f32 %v466, %v186
  %v468 = vmul.f32 %v384, %v384
  %v469 = vmul.f32 %v387, %v387
  %v470 = vmul.f32 %v392, %v392
  %v471 = vmul.f32 %v395, %v395
  %v472 = vmul.f32 %v400, %v400
  %v473 = vmul.f32 %v403, %v403
  %v474 = vmul.f32 %v408, %v408
  %v475 = vmul.f32 %v411, %v411
  %v476 = vmul.f32 %v416, %v416
  %v477 = vmul.f32 %v419, %v419
  %v478 = vmul.f32 %v424, %v424
  %v479 = vmul.f32 %v427, %v427
  %v480 = vmul.f32 %v432, %v432
  %v481 = vmul.f32 %v435, %v435
  %v482 = vmul.f32 %v440, %v440
  %v483 = vmul.f32 %v443, %v443
  %v484 = vadd.f32 %v468, %v469
  %v485 = vadd.f32 %v484, %v470
  %v486 = vadd.f32 %v485, %v471
  %v487 = vadd.f32 %v486, %v472
  %v488 = vadd.f32 %v487, %v473
  %v489 = vadd.f32 %v488, %v474
  %v490 = vadd.f32 %v489, %v475
  %v491 = vadd.f32 %v490, %v476
  %v492 = vadd.f32 %v491, %v477
  %v493 = vadd.f32 %v492, %v478
  %v494 = vadd.f32 %v493, %v479
  %v495 = vadd.f32 %v494, %v480
  %v496 = vadd.f32 %v495, %v481
  %v497 = vadd.f32 %v496, %v482
  %v498 = vadd.f32 %v497, %v483
  %v499 = vrot.slane %v498, 4
  %v500 = vadd.f32 %v498, %v499
  %v501 = vrot.slane %v500, 2
  %v502 = vadd.f32 %v500, %v501
  %v503 = vrot.slane %v502, 1
  %v504 = vadd.f32 %v502, %v503
  %v505 = vmul.f32 %v504, %v186
  %v506 = vmul.f32 %v467, %v467
  %v507 = vsub.f32 %v505, %v506
  %v508 = vmax.f32 %v507, 0.0
  %v509 = vadd.f32 %v508, 1e-05
  %v510 = vrsqrt.pop %v509
  %v511 = vmul.f32 %v18, %v510
  %v512 = vlaneseq
  %v513 = vshrl.u32 %v512, 7
  %v514 = vsub.s32 2, %v513
  %v515 = vrot.slane %v511, %v514
  %v516 = vmul.f32 %v384, %v515
  %v517 = vmul.f32 %v387, %v515
  %v518 = vmul.f32 %v392, %v515
  %v519 = vmul.f32 %v395, %v515
  %v520 = vmul.f32 %v400, %v515
  %v521 = vmul.f32 %v403, %v515
  %v522 = vmul.f32 %v408, %v515
  %v523 = vmul.f32 %v411, %v515
  %v524 = vmul.f32 %v416, %v515
  %v525 = vmul.f32 %v419, %v515
  %v526 = vmul.f32 %v424, %v515
  %v527 = vmul.f32 %v427, %v515
  %v528 = vmul.f32 %v432, %v515
  %v529 = vmul.f32 %v435, %v515
  %v530 = vmul.f32 %v440, %v515
  %v531 = vmul.f32 %v443, %v515
  %v532 = vmul.f32 %v467, %v511
  %v534 = vrot.slane %v532, 7
  %v536 = vsub.f32 %v18, %v534
  %v537 = vlaneseq
  %v538 = vshrl.u32 %v537, 7
  %v539 = vsub.s32 3, %v538
  %v540 = vrot.slane %v536, %v539
  %v541 = vadd.f32 %v516, %v540
  %v542 = vadd.f32 %v517, %v540
  %v543 = vadd.f32 %v518, %v540
  %v544 = vadd.f32 %v519, %v540
  %v545 = vadd.f32 %v520, %v540
  %v546 = vadd.f32 %v521, %v540
  %v547 = vadd.f32 %v522, %v540
  %v548 = vadd.f32 %v523, %v540
  %v549 = vadd.f32 %v524, %v540
  %v550 = vadd.f32 %v525, %v540
  %v551 = vadd.f32 %v526, %v540
  %v552 = vadd.f32 %v527, %v540
  %v553 = vadd.f32 %v528, %v540
  %v554 = vadd.f32 %v529, %v540
  %v555 = vadd.f32 %v530, %v540
  %v556 = vadd.f32 %v531, %v540
  %v557 = vmul.f32 %v541, 0.01
  %v558 = vmul.f32 %v542, 0.01
  %v559 = vmul.f32 %v543, 0.01
  %v560 = vmul.f32 %v544, 0.01
  %v561 = vmul.f32 %v545, 0.01
  %v562 = vmul.f32 %v546, 0.01
  %v563 = vmul.f32 %v547, 0.01
  %v564 = vmul.f32 %v548, 0.01
  %v565 = vmul.f32 %v549, 0.01
  %v566 = vmul.f32 %v550, 0.01
  %v567 = vmul.f32 %v551, 0.01
  %v568 = vmul.f32 %v552, 0.01
  %v569 = vmul.f32 %v553, 0.01
  %v570 = vmul.f32 %v554, 0.01
  %v571 = vmul.f32 %v555, 0.01
  %v572 = vmul.f32 %v556, 0.01
  %v573 = vmax.f32 %v541, %v557
  %v574 = vmax.f32 %v542, %v558
  %v575 = vmax.f32 %v543, %v559
  %v576 = vmax.f32 %v544, %v560
  %v577 = vmax.f32 %v545, %v561
  %v578 = vmax.f32 %v546, %v562
  %v579 = vmax.f32 %v547, %v563
  %v580 = vmax.f32 %v548, %v564
  %v581 = vmax.f32 %v549, %v565
  %v582 = vmax.f32 %v550, %v566
  %v583 = vmax.f32 %v551, %v567
  %v584 = vmax.f32 %v552, %v568
  %v585 = vmax.f32 %v553, %v569
  %v586 = vmax.f32 %v554, %v570
  %v587 = vmax.f32 %v555, %v571
  %v588 = vmax.f32 %v556, %v572
  %v589 = vlaneseq
  %v590 = vshrl.u32 %v589, 7
  %v591 = vsub.s32 4, %v590
  %v592 = vrot.slane %v18, %v591
  %v593 = vmul.f32 %v573, %v592
  %v594 = vmul.f32 %v574, %v592
  %v595 = vmul.f32 %v575, %v592
  %v596 = vmul.f32 %v576, %v592
  %v597 = vmul.f32 %v577, %v592
  %v598 = vmul.f32 %v578, %v592
  %v599 = vmul.f32 %v579, %v592
  %v600 = vmul.f32 %v580, %v592
  %v601 = vmul.f32 %v581, %v592
  %v602 = vmul.f32 %v582, %v592
  %v603 = vmul.f32 %v583, %v592
  %v604 = vmul.f32 %v584, %v592
  %v605 = vmul.f32 %v585, %v592
  %v606 = vmul.f32 %v586, %v592
  %v607 = vmul.f32 %v587, %v592
  %v608 = vmul.f32 %v588, %v592
  %609 = vadd.xlane.f32.xlu0 %v593
  %v610 = vpop.xlane.xlu0 %609
  %611 = vadd.xlane.f32.xlu0 %v594
  %v612 = vpop.xlane.xlu0 %611
  %613 = vadd.xlane.f32.xlu0 %v595
  %v614 = vpop.xlane.xlu0 %613
  %615 = vadd.xlane.f32.xlu0 %v596
  %v616 = vpop.xlane.xlu0 %615
  %617 = vadd.xlane.f32.xlu0 %v597
  %v618 = vpop.xlane.xlu0 %617
  %619 = vadd.xlane.f32.xlu0 %v598
  %v620 = vpop.xlane.xlu0 %619
  %621 = vadd.xlane.f32.xlu0 %v599
  %v622 = vpop.xlane.xlu0 %621
  %623 = vadd.xlane.f32.xlu0 %v600
  %v624 = vpop.xlane.xlu0 %623
  %625 = vadd.xlane.f32.xlu0 %v601
  %v626 = vpop.xlane.xlu0 %625
  %627 = vadd.xlane.f32.xlu0 %v602
  %v628 = vpop.xlane.xlu0 %627
  %629 = vadd.xlane.f32.xlu0 %v603
  %v630 = vpop.xlane.xlu0 %629
  %631 = vadd.xlane.f32.xlu0 %v604
  %v632 = vpop.xlane.xlu0 %631
  %633 = vadd.xlane.f32.xlu0 %v605
  %v634 = vpop.xlane.xlu0 %633
  %635 = vadd.xlane.f32.xlu0 %v606
  %v636 = vpop.xlane.xlu0 %635
  %637 = vadd.xlane.f32.xlu0 %v607
  %v638 = vpop.xlane.xlu0 %637
  %639 = vadd.xlane.f32.xlu0 %v608
  %v640 = vpop.xlane.xlu0 %639
  %v641 = vlaneseq
  %v642 = vshrl.u32 %v641, 7
  %v643 = vsub.s32 5, %v642
  %v644 = vrot.slane %v18, %v643
  %v645 = vadd.f32 %v610, %v644
  %v646 = vadd.f32 %v612, %v644
  %v647 = vadd.f32 %v614, %v644
  %v648 = vadd.f32 %v616, %v644
  %v649 = vadd.f32 %v618, %v644
  %v650 = vadd.f32 %v620, %v644
  %v651 = vadd.f32 %v622, %v644
  %v652 = vadd.f32 %v624, %v644
  %v653 = vadd.f32 %v626, %v644
  %v654 = vadd.f32 %v628, %v644
  %v655 = vadd.f32 %v630, %v644
  %v656 = vadd.f32 %v632, %v644
  %v657 = vadd.f32 %v634, %v644
  %v658 = vadd.f32 %v636, %v644
  %v659 = vadd.f32 %v638, %v644
  %v660 = vadd.f32 %v640, %v644
  %vm661 = vcmask 7168
  %662 = vst.msk [vmem:[%s3] sm:$0xff] %vm661, %v645
  %663 = vst.msk [vmem:[%s3 + $0x8] sm:$0xff] %vm661, %v646
  %664 = vst.msk [vmem:[%s3 + $0x10] sm:$0xff] %vm661, %v647
  %665 = vst.msk [vmem:[%s3 + $0x18] sm:$0xff] %vm661, %v648
  %666 = vst.msk [vmem:[%s3 + $0x20] sm:$0xff] %vm661, %v649
  %667 = vst.msk [vmem:[%s3 + $0x28] sm:$0xff] %vm661, %v650
  %668 = vst.msk [vmem:[%s3 + $0x30] sm:$0xff] %vm661, %v651
  %669 = vst.msk [vmem:[%s3 + $0x38] sm:$0xff] %vm661, %v652
  %670 = vst.msk [vmem:[%s3 + $0x40] sm:$0xff] %vm661, %v653
  %671 = vst.msk [vmem:[%s3 + $0x48] sm:$0xff] %vm661, %v654
  %672 = vst.msk [vmem:[%s3 + $0x50] sm:$0xff] %vm661, %v655
  %673 = vst.msk [vmem:[%s3 + $0x58] sm:$0xff] %vm661, %v656
  %674 = vst.msk [vmem:[%s3 + $0x60] sm:$0xff] %vm661, %v657
  %675 = vst.msk [vmem:[%s3 + $0x68] sm:$0xff] %vm661, %v658
  %676 = vst.msk [vmem:[%s3 + $0x70] sm:$0xff] %vm661, %v659
  %677 = vst.msk [vmem:[%s3 + $0x78] sm:$0xff] %vm661, %v660
  // Predicated region
  $region14: #{tpu_custom_call.1} parent=0 // pred_check
    _
  $region15: #{tpu_custom_call.1} parent=0 // pred_check_branch
    %679 = sbr.rel (0) target = $region17
  $region16: #{tpu_custom_call.1} parent=0 // pred_region
    _
  $region17: #{tpu_custom_call.1} parent=0 // pred_fallthru
    _
  // Predicated region
  $region18: #{tpu_custom_call.1} parent=0 // pred_check
    _
  $region19: #{tpu_custom_call.1} parent=0 // pred_check_branch
    %681 = sbr.rel (0) target = $region21
  $region20: #{tpu_custom_call.1} parent=0 // pred_region
    _
  $region21: #{tpu_custom_call.1} parent=0 // pred_fallthru
    _

</llo_original>
